<compile_context>
chip_gen: v7x
topology: tpu7x:2x2x1
jax: 0.10.0
libtpu: 0.0.40
codegen_flags: <defaults>
</compile_context>

<pallas_src>
import numpy as np
import jax
import jax.numpy as jnp
from jax.experimental import pallas as pl
from jax.experimental.pallas import tpu as pltpu


# ---- configuration (mirrors conf.* in __init__) ----
N_CTX = 15                 # odd => even/odd position lists both have (n_ctx+1)//2 entries
P_DIM = 16                 # positional one-hot width (>= n_ctx + 1)
D_EMB = 32                 # emb_dim
D_VOCAB = 8                # num label classes
D_CONTENT = D_EMB - P_DIM  # emb_dim_content
SEQ = (N_CTX + 1) // 2     # SS = 8


def _embedder_kernel(ex_ref, lbl_ref, emb_ref, sex_ref, slb_ref, pe_ref, out_ref):
    # ex_ref : (Bb, SS*Dc)  f32  examples, lane-dense (chunk s at lanes [s*Dc, (s+1)*Dc))
    # lbl_ref: (Bb, SS*Dc)  i32  labels[b, s] replicated across that chunk's lanes
    # emb_ref: (V, SS*Dc)   f32  label embedding table tiled SS times along lanes
    # sex_ref: (SS*Dc, W)   bf16 0/1 scatter: example chunk s -> output cols [s*2E, s*2E+Dc)
    # slb_ref: (SS*Dc, W)   bf16 0/1 scatter: label   chunk s -> output cols [s*2E+E, ...+Dc)
    # pe_ref : (1, W)       f32  positional one-hots at their packed output columns
    # out_ref: (Bb, W)      f32  W = (2*SS-1)*E interleaved output rows (lane-dense)
    ex = ex_ref[...]
    lbl = lbl_ref[...]
    emb = emb_ref[...]
    V = emb.shape[0]

    # ---- label gather: V-way VPU where-select on full-width 128-lane vregs ----
    # Out-of-range labels produce a zero embedding (same caveat as a one-hot matmul).
    gathered = jnp.zeros_like(ex)
    for v in range(V):                                   # static unroll, pure VALU work
        gathered = jnp.where(lbl == v, emb[v:v + 1, :], gathered)

    def scatter(x, s_ref):
        # Exact f32 lane scatter/permute via a 0/1 matmul on the idle MXU.
        # 3-term bf16 split keeps f32 values to ~2^-24 relative error regardless of
        # the MXU's bf16 input format (no reliance on HIGHEST-precision lowering).
        s_mat = s_ref[...]
        acc = jnp.zeros((x.shape[0], s_mat.shape[1]), jnp.float32)
        r = x
        for _ in range(3):
            p = r.astype(jnp.bfloat16)
            acc = acc + jnp.dot(p, s_mat, preferred_element_type=jnp.float32)
            r = r - p.astype(jnp.float32)
        return acc

    # Full interleaved rows assembled in registers; one wide lane-dense store.
    row = scatter(ex, sex_ref) + scatter(gathered, slb_ref) + pe_ref[...]
    out_ref[...] = row.astype(out_ref.dtype)


def _choose_batch_block(batch, block_b):
    """Full batch if it fits; else the largest multiple-of-8 divisor of `batch` in
    (block_b/2, block_b] (avoids the wrapper pad copy); else fall back to padding."""
    if batch <= block_b:
        return batch, False
    hi = (block_b // 8) * 8
    lo = max(8, (block_b // 2 // 8) * 8)
    for cand in range(hi, lo - 1, -8):
        if cand > 0 and batch % cand == 0:
            return cand, False
    return max(8, hi), True


def input_embedder(examples, labels, label_embs, *,
                   p_dim=P_DIM, n_ctx=N_CTX, block_b=512):
    """examples: [B, SS, Dc] f32, labels: [B, SS] int, label_embs: [V, Dc] f32.
    Returns [B, 2*SS-1, Dc+p_dim].  For v7x pick block_b ~ round_up(B/2, 8) so both
    TensorCores get grid steps; on v5e/v6e one large block minimizes per-step overhead."""
    B, SS, Dc = examples.shape
    V, Dc2 = label_embs.shape
    assert Dc == Dc2
    assert p_dim >= n_ctx + 1, "positional one-hots would silently be all-zero"
    assert SS == (n_ctx + 1) // 2
    E = Dc + p_dim            # 32
    T = 2 * SS - 1            # 15
    W = T * E                 # 480 : packed interleaved row (trailing label already dropped)
    K = SS * Dc               # 128 : lane-dense input width
    dtype = examples.dtype

    # ---- lane-dense inputs (free reshape for examples; tiny repeat/tile for the rest) ----
    ex2d = examples.reshape(B, K)
    lbl_rep = jnp.repeat(labels.astype(jnp.int32), Dc, axis=-1)     # (B, K)
    emb_tiled = jnp.tile(label_embs.astype(dtype), (1, SS))         # (V, K)

    # ---- grid-invariant constants: 0/1 scatter matrices + positional row (built once) ----
    s_ex = np.zeros((K, W), np.float32)
    s_lb = np.zeros((K, W), np.float32)
    pe_row = np.zeros((1, W), np.float32)
    for s in range(SS):
        base = s * 2 * E                                 # start of token 2s
        for d in range(Dc):
            s_ex[s * Dc + d, base + d] = 1.0             # examples -> even tokens
        pe_row[0, base + Dc + 2 * s] = 1.0               # one_hot(2s, p_dim) on even tokens
        if s < SS - 1:                                   # last label token is dropped
            for d in range(Dc):
                s_lb[s * Dc + d, base + E + d] = 1.0     # label embs -> odd tokens
            pe_row[0, base + E + Dc + 2 * s + 1] = 1.0   # one_hot(2s+1, p_dim) on odd tokens
    s_ex = jnp.asarray(s_ex, jnp.bfloat16)               # 0/1 entries are exact in bf16
    s_lb = jnp.asarray(s_lb, jnp.bfloat16)
    pe_row = jnp.asarray(pe_row, dtype)

    # ---- batch blocking: avoid the wrapper pad copy whenever possible ----
    Bb, needs_pad = _choose_batch_block(B, block_b)
    Bp = B
    if needs_pad:
        Bp = Bb * pl.cdiv(B, Bb)
        ex2d = jnp.pad(ex2d, ((0, Bp - B), (0, 0)))
        lbl_rep = jnp.pad(lbl_rep, ((0, Bp - B), (0, 0)))   # padded labels index row 0 (valid)

    out = pl.pallas_call(
        _embedder_kernel,
        out_shape=jax.ShapeDtypeStruct((Bp, W), dtype),
        grid_spec=pltpu.PrefetchScalarGridSpec(
            num_scalar_prefetch=0,
            grid=(Bp // Bb,),
            in_specs=[
                pl.BlockSpec((Bb, K), lambda b: (b, 0)),
                pl.BlockSpec((Bb, K), lambda b: (b, 0)),
                pl.BlockSpec((V, K), lambda b: (0, 0)),
                pl.BlockSpec((K, W), lambda b: (0, 0)),
                pl.BlockSpec((K, W), lambda b: (0, 0)),
                pl.BlockSpec((1, W), lambda b: (0, 0)),
            ],
            out_specs=pl.BlockSpec((Bb, W), lambda b: (b, 0)),
        ),
        compiler_params=pltpu.CompilerParams(
            dimension_semantics=("parallel",)),  # batch blocks shard across TCs on v7x
    )(ex2d, lbl_rep, emb_tiled, s_ex, s_lb, pe_row)

    # Free row-major reshape realizes the even/odd interleave; no [:T] slice copy needed.
    out = out.reshape(Bp, T, E)
    if needs_pad:
        out = out[:B]        # only in the rare ragged fallback
    return out


def _reference(examples, labels, label_embs):
    B, SS, Dc = examples.shape
    pe_even = jax.nn.one_hot(jnp.arange(0, N_CTX + 1, 2), P_DIM, dtype=examples.dtype)
    pe_odd = jax.nn.one_hot(jnp.arange(1, N_CTX + 1, 2), P_DIM, dtype=examples.dtype)
    h_example = jnp.concatenate([examples, jnp.tile(pe_even[None], (B, 1, 1))], axis=2)
    h_label = jnp.concatenate(
        [label_embs[labels], jnp.tile(pe_odd[None], (B, 1, 1))], axis=2)
    hh = jnp.zeros((B, 2 * SS - 1, D_EMB), examples.dtype)
    hh = hh.at[:, 0::2].set(h_example)
    hh = hh.at[:, 1::2].set(h_label[:, :-1])
    return hh


if __name__ == "__main__":
    key = jax.random.PRNGKey(0)
    k_ex, k_lbl, k_emb = jax.random.split(key, 3)

    B = 2
    examples = jax.random.normal(k_ex, (B, SEQ, D_CONTENT), dtype=jnp.float32)
    labels = jax.random.randint(k_lbl, (B, SEQ), 0, D_VOCAB, dtype=jnp.int32)
    # Deterministic parameter init (matches torch.randn(V, Dc) / sqrt(Dc) shape/scale).
    label_embs = (jax.random.normal(k_emb, (D_VOCAB, D_CONTENT), dtype=jnp.float32)
                  / np.sqrt(D_CONTENT)).astype(jnp.float32)
    # TODO(synk): self.Emb (nn.Linear) is defined in __init__ but never used in forward.

    out = input_embedder(examples, labels, label_embs)
    jax.block_until_ready(out)
    np.testing.assert_allclose(np.asarray(out),
                               np.asarray(_reference(examples, labels, label_embs)),
                               rtol=1e-5, atol=1e-5)

    # Second check: multi-step grid (B=200, block 40 -> 5 steps, no pad, no tail slice).
    B2 = 200
    k_ex2, k_lbl2 = jax.random.split(jax.random.PRNGKey(1))
    examples2 = jax.random.normal(k_ex2, (B2, SEQ, D_CONTENT), dtype=jnp.float32)
    labels2 = jax.random.randint(k_lbl2, (B2, SEQ), 0, D_VOCAB, dtype=jnp.int32)
    out2 = input_embedder(examples2, labels2, label_embs, block_b=64)
    jax.block_until_ready(out2)
    np.testing.assert_allclose(np.asarray(out2),
                               np.asarray(_reference(examples2, labels2, label_embs)),
                               rtol=1e-5, atol=1e-5)

    print("KERNEL_OK")
</pallas_src>

<mosaic_0001>
module attributes {stable_mosaic.version = 11 : i64} {
  func.func @_embedder_kernel(%arg0: i32, %arg1: memref<2x128xf32, #tpu.memory_space<vmem>>, %arg2: memref<2x128xi32, #tpu.memory_space<vmem>>, %arg3: memref<8x128xf32, #tpu.memory_space<vmem>>, %arg4: memref<128x480xbf16, #tpu.memory_space<vmem>>, %arg5: memref<128x480xbf16, #tpu.memory_space<vmem>>, %arg6: memref<1x480xf32, #tpu.memory_space<vmem>>, %arg7: memref<2x480xf32, #tpu.memory_space<vmem>>) attributes {dimension_semantics = [#tpu.dimension_semantics<parallel>], iteration_bounds = array<i64: 1>, scalar_prefetch = 0 : i64, scratch_operands = 0 : i64, tpu.core_type = #tpu.core_type<tc>, window_params = [{transform_indices = @transform_0, window_bounds = array<i64: 2, 128>}, {transform_indices = @transform_1, window_bounds = array<i64: 2, 128>}, {pipeline_mode = #tpu.pipeline_mode<synchronous>, transform_indices = @transform_2, window_bounds = array<i64: 8, 128>}, {pipeline_mode = #tpu.pipeline_mode<synchronous>, transform_indices = @transform_3, window_bounds = array<i64: 128, 480>}, {pipeline_mode = #tpu.pipeline_mode<synchronous>, transform_indices = @transform_4, window_bounds = array<i64: 128, 480>}, {pipeline_mode = #tpu.pipeline_mode<synchronous>, transform_indices = @transform_5, window_bounds = array<i64: 1, 480>}, {transform_indices = @transform_6, window_bounds = array<i64: 2, 480>}]} {
    %c0 = arith.constant 0 : index
    %c0_0 = arith.constant 0 : index
    %0 = vector.load %arg1[%c0, %c0_0] : memref<2x128xf32, #tpu.memory_space<vmem>>, vector<2x128xf32>
    %c0_1 = arith.constant 0 : index
    %c0_2 = arith.constant 0 : index
    %1 = vector.load %arg2[%c0_1, %c0_2] : memref<2x128xi32, #tpu.memory_space<vmem>>, vector<2x128xi32>
    %c0_3 = arith.constant 0 : index
    %c0_4 = arith.constant 0 : index
    %2 = vector.load %arg3[%c0_3, %c0_4] : memref<8x128xf32, #tpu.memory_space<vmem>>, vector<8x128xf32>
    %cst = arith.constant 0.000000e+00 : f32
    %3 = vector.broadcast %cst : f32 to vector<2x128xf32>
    %c0_i32 = arith.constant 0 : i32
    %4 = vector.broadcast %c0_i32 : i32 to vector<2x128xi32>
    %5 = arith.cmpi eq, %1, %4 : vector<2x128xi32>
    %6 = vector.extract_strided_slice %2 {offsets = [0, 0], sizes = [1, 128], strides = [1, 1]} : vector<8x128xf32> to vector<1x128xf32>
    %7 = vector.shape_cast %6 : vector<1x128xf32> to vector<1x128xf32>
    %8 = vector.broadcast %7 : vector<1x128xf32> to vector<2x128xf32>
    %9 = arith.select %5, %8, %3 : vector<2x128xi1>, vector<2x128xf32>
    %c1_i32 = arith.constant 1 : i32
    %10 = vector.broadcast %c1_i32 : i32 to vector<2x128xi32>
    %11 = arith.cmpi eq, %1, %10 : vector<2x128xi32>
    %12 = vector.extract_strided_slice %2 {offsets = [1, 0], sizes = [1, 128], strides = [1, 1]} : vector<8x128xf32> to vector<1x128xf32>
    %13 = vector.shape_cast %12 : vector<1x128xf32> to vector<1x128xf32>
    %14 = vector.broadcast %13 : vector<1x128xf32> to vector<2x128xf32>
    %15 = arith.select %11, %14, %9 : vector<2x128xi1>, vector<2x128xf32>
    %c2_i32 = arith.constant 2 : i32
    %16 = vector.broadcast %c2_i32 : i32 to vector<2x128xi32>
    %17 = arith.cmpi eq, %1, %16 : vector<2x128xi32>
    %18 = vector.extract_strided_slice %2 {offsets = [2, 0], sizes = [1, 128], strides = [1, 1]} : vector<8x128xf32> to vector<1x128xf32>
    %19 = vector.shape_cast %18 : vector<1x128xf32> to vector<1x128xf32>
    %20 = vector.broadcast %19 : vector<1x128xf32> to vector<2x128xf32>
    %21 = arith.select %17, %20, %15 : vector<2x128xi1>, vector<2x128xf32>
    %c3_i32 = arith.constant 3 : i32
    %22 = vector.broadcast %c3_i32 : i32 to vector<2x128xi32>
    %23 = arith.cmpi eq, %1, %22 : vector<2x128xi32>
    %24 = vector.extract_strided_slice %2 {offsets = [3, 0], sizes = [1, 128], strides = [1, 1]} : vector<8x128xf32> to vector<1x128xf32>
    %25 = vector.shape_cast %24 : vector<1x128xf32> to vector<1x128xf32>
    %26 = vector.broadcast %25 : vector<1x128xf32> to vector<2x128xf32>
    %27 = arith.select %23, %26, %21 : vector<2x128xi1>, vector<2x128xf32>
    %c4_i32 = arith.constant 4 : i32
    %28 = vector.broadcast %c4_i32 : i32 to vector<2x128xi32>
    %29 = arith.cmpi eq, %1, %28 : vector<2x128xi32>
    %30 = vector.extract_strided_slice %2 {offsets = [4, 0], sizes = [1, 128], strides = [1, 1]} : vector<8x128xf32> to vector<1x128xf32>
    %31 = vector.shape_cast %30 : vector<1x128xf32> to vector<1x128xf32>
    %32 = vector.broadcast %31 : vector<1x128xf32> to vector<2x128xf32>
    %33 = arith.select %29, %32, %27 : vector<2x128xi1>, vector<2x128xf32>
    %c5_i32 = arith.constant 5 : i32
    %34 = vector.broadcast %c5_i32 : i32 to vector<2x128xi32>
    %35 = arith.cmpi eq, %1, %34 : vector<2x128xi32>
    %36 = vector.extract_strided_slice %2 {offsets = [5, 0], sizes = [1, 128], strides = [1, 1]} : vector<8x128xf32> to vector<1x128xf32>
    %37 = vector.shape_cast %36 : vector<1x128xf32> to vector<1x128xf32>
    %38 = vector.broadcast %37 : vector<1x128xf32> to vector<2x128xf32>
    %39 = arith.select %35, %38, %33 : vector<2x128xi1>, vector<2x128xf32>
    %c6_i32 = arith.constant 6 : i32
    %40 = vector.broadcast %c6_i32 : i32 to vector<2x128xi32>
    %41 = arith.cmpi eq, %1, %40 : vector<2x128xi32>
    %42 = vector.extract_strided_slice %2 {offsets = [6, 0], sizes = [1, 128], strides = [1, 1]} : vector<8x128xf32> to vector<1x128xf32>
    %43 = vector.shape_cast %42 : vector<1x128xf32> to vector<1x128xf32>
    %44 = vector.broadcast %43 : vector<1x128xf32> to vector<2x128xf32>
    %45 = arith.select %41, %44, %39 : vector<2x128xi1>, vector<2x128xf32>
    %c7_i32 = arith.constant 7 : i32
    %46 = vector.broadcast %c7_i32 : i32 to vector<2x128xi32>
    %47 = arith.cmpi eq, %1, %46 : vector<2x128xi32>
    %48 = vector.extract_strided_slice %2 {offsets = [7, 0], sizes = [1, 128], strides = [1, 1]} : vector<8x128xf32> to vector<1x128xf32>
    %49 = vector.shape_cast %48 : vector<1x128xf32> to vector<1x128xf32>
    %50 = vector.broadcast %49 : vector<1x128xf32> to vector<2x128xf32>
    %51 = arith.select %47, %50, %45 : vector<2x128xi1>, vector<2x128xf32>
    %c0_5 = arith.constant 0 : index
    %c0_6 = arith.constant 0 : index
    %52 = vector.load %arg4[%c0_5, %c0_6] : memref<128x480xbf16, #tpu.memory_space<vmem>>, vector<128x480xbf16>
    %cst_7 = arith.constant 0.000000e+00 : f32
    %53 = vector.broadcast %cst_7 : f32 to vector<2x480xf32>
    %54 = arith.truncf %0 : vector<2x128xf32> to vector<2x128xbf16>
    %cst_8 = arith.constant dense<0.000000e+00> : vector<2x480xf32>
    %55 = tpu.matmul %54, %52, %cst_8 {dimension_numbers = #tpu.dot_dimension_numbers<[1], [0], [0], [1], [0, 0, 1, 1], [], []>} : vector<2x128xbf16>, vector<128x480xbf16>, vector<2x480xf32> -> vector<2x480xf32>
    %56 = arith.addf %53, %55 : vector<2x480xf32>
    %57 = arith.extf %54 : vector<2x128xbf16> to vector<2x128xf32>
    %58 = arith.subf %0, %57 : vector<2x128xf32>
    %59 = arith.truncf %58 : vector<2x128xf32> to vector<2x128xbf16>
    %cst_9 = arith.constant dense<0.000000e+00> : vector<2x480xf32>
    %60 = tpu.matmul %59, %52, %cst_9 {dimension_numbers = #tpu.dot_dimension_numbers<[1], [0], [0], [1], [0, 0, 1, 1], [], []>} : vector<2x128xbf16>, vector<128x480xbf16>, vector<2x480xf32> -> vector<2x480xf32>
    %61 = arith.addf %56, %60 : vector<2x480xf32>
    %62 = arith.extf %59 : vector<2x128xbf16> to vector<2x128xf32>
    %63 = arith.subf %58, %62 : vector<2x128xf32>
    %64 = arith.truncf %63 : vector<2x128xf32> to vector<2x128xbf16>
    %cst_10 = arith.constant dense<0.000000e+00> : vector<2x480xf32>
    %65 = tpu.matmul %64, %52, %cst_10 {dimension_numbers = #tpu.dot_dimension_numbers<[1], [0], [0], [1], [0, 0, 1, 1], [], []>} : vector<2x128xbf16>, vector<128x480xbf16>, vector<2x480xf32> -> vector<2x480xf32>
    %66 = arith.addf %61, %65 : vector<2x480xf32>
    %c0_11 = arith.constant 0 : index
    %c0_12 = arith.constant 0 : index
    %67 = vector.load %arg5[%c0_11, %c0_12] : memref<128x480xbf16, #tpu.memory_space<vmem>>, vector<128x480xbf16>
    %cst_13 = arith.constant 0.000000e+00 : f32
    %68 = vector.broadcast %cst_13 : f32 to vector<2x480xf32>
    %69 = arith.truncf %51 : vector<2x128xf32> to vector<2x128xbf16>
    %cst_14 = arith.constant dense<0.000000e+00> : vector<2x480xf32>
    %70 = tpu.matmul %69, %67, %cst_14 {dimension_numbers = #tpu.dot_dimension_numbers<[1], [0], [0], [1], [0, 0, 1, 1], [], []>} : vector<2x128xbf16>, vector<128x480xbf16>, vector<2x480xf32> -> vector<2x480xf32>
    %71 = arith.addf %68, %70 : vector<2x480xf32>
    %72 = arith.extf %69 : vector<2x128xbf16> to vector<2x128xf32>
    %73 = arith.subf %51, %72 : vector<2x128xf32>
    %74 = arith.truncf %73 : vector<2x128xf32> to vector<2x128xbf16>
    %cst_15 = arith.constant dense<0.000000e+00> : vector<2x480xf32>
    %75 = tpu.matmul %74, %67, %cst_15 {dimension_numbers = #tpu.dot_dimension_numbers<[1], [0], [0], [1], [0, 0, 1, 1], [], []>} : vector<2x128xbf16>, vector<128x480xbf16>, vector<2x480xf32> -> vector<2x480xf32>
    %76 = arith.addf %71, %75 : vector<2x480xf32>
    %77 = arith.extf %74 : vector<2x128xbf16> to vector<2x128xf32>
    %78 = arith.subf %73, %77 : vector<2x128xf32>
    %79 = arith.truncf %78 : vector<2x128xf32> to vector<2x128xbf16>
    %cst_16 = arith.constant dense<0.000000e+00> : vector<2x480xf32>
    %80 = tpu.matmul %79, %67, %cst_16 {dimension_numbers = #tpu.dot_dimension_numbers<[1], [0], [0], [1], [0, 0, 1, 1], [], []>} : vector<2x128xbf16>, vector<128x480xbf16>, vector<2x480xf32> -> vector<2x480xf32>
    %81 = arith.addf %76, %80 : vector<2x480xf32>
    %82 = arith.addf %66, %81 : vector<2x480xf32>
    %c0_17 = arith.constant 0 : index
    %c0_18 = arith.constant 0 : index
    %83 = vector.load %arg6[%c0_17, %c0_18] : memref<1x480xf32, #tpu.memory_space<vmem>>, vector<1x480xf32>
    %84 = vector.broadcast %83 : vector<1x480xf32> to vector<2x480xf32>
    %85 = arith.addf %82, %84 : vector<2x480xf32>
    %c0_19 = arith.constant 0 : index
    %c0_20 = arith.constant 0 : index
    %86 = vector.load %arg7[%c0_19, %c0_20] : memref<2x480xf32, #tpu.memory_space<vmem>>, vector<2x480xf32>
    tpu.vector_store %arg7[%c0_19, %c0_20], %85 {strides = array<i32>} : memref<2x480xf32, #tpu.memory_space<vmem>>, vector<2x480xf32>,
    return
  }
  func.func @transform_0(%arg0: i32) -> (i32, i32) {
    %c0_i32 = arith.constant 0 : i32
    %c0_i32_0 = arith.constant 0 : i32
    return %arg0, %c0_i32 : i32, i32
  }
  func.func @transform_1(%arg0: i32) -> (i32, i32) {
    %c0_i32 = arith.constant 0 : i32
    %c0_i32_0 = arith.constant 0 : i32
    return %arg0, %c0_i32 : i32, i32
  }
  func.func @transform_2(%arg0: i32) -> (i32, i32) {
    %c0_i32 = arith.constant 0 : i32
    %c0_i32_0 = arith.constant 0 : i32
    %c0_i32_1 = arith.constant 0 : i32
    return %c0_i32, %c0_i32_0 : i32, i32
  }
  func.func @transform_3(%arg0: i32) -> (i32, i32) {
    %c0_i32 = arith.constant 0 : i32
    %c0_i32_0 = arith.constant 0 : i32
    %c0_i32_1 = arith.constant 0 : i32
    return %c0_i32, %c0_i32_0 : i32, i32
  }
  func.func @transform_4(%arg0: i32) -> (i32, i32) {
    %c0_i32 = arith.constant 0 : i32
    %c0_i32_0 = arith.constant 0 : i32
    %c0_i32_1 = arith.constant 0 : i32
    return %c0_i32, %c0_i32_0 : i32, i32
  }
  func.func @transform_5(%arg0: i32) -> (i32, i32) {
    %c0_i32 = arith.constant 0 : i32
    %c0_i32_0 = arith.constant 0 : i32
    %c0_i32_1 = arith.constant 0 : i32
    return %c0_i32, %c0_i32_0 : i32, i32
  }
  func.func @transform_6(%arg0: i32) -> (i32, i32) {
    %c0_i32 = arith.constant 0 : i32
    %c0_i32_0 = arith.constant 0 : i32
    return %arg0, %c0_i32 : i32, i32
  }
}

</mosaic_0001>

<llo_original>
// kernel: tpu_custom_call.1
$region0: #{tpu_custom_call.1}
  #allocation0 [shape = 'u32[]', space=smem, size = 0x4, offset = 0x4, fixed_abs, tag = 'smem constant byte address 0x4 - core index']
  #allocation1 [shape = 'u32[144,128]{1,0:T(1,128)}', space=vmem, size = 0x12000, scoped, tag = 'internal scratch']
  %s0 = inlined_call_operand.vmem [shape: f32[2,128], index: 0, kind: input, shape index: {}]
  %s1 = inlined_call_operand.vmem [shape: s32[2,128], index: 1, kind: input, shape index: {}]
  %s2 = inlined_call_operand.vmem [shape: f32[8,128], index: 2, kind: input, shape index: {}]
  %s3 = inlined_call_operand.vmem [shape: bf16[128,480], index: 3, kind: input, shape index: {}]
  %s4 = inlined_call_operand.vmem [shape: bf16[128,480], index: 4, kind: input, shape index: {}]
  %s5 = inlined_call_operand.vmem [shape: f32[1,480], index: 5, kind: input, shape index: {}]
  %s6 = inlined_call_operand.hbm [shape: f32[2,480], index: 6, kind: output, shape index: {}]
  %s7 = sld [smem:[#allocation0]]
  $region34: #{tpu_custom_call.1} parent=0
    _
  %s9 = ssub.s32 1, %s7
  %s10 = scalar_select 0, %s9, %s7
  $region1: #{tpu_custom_call.1} parent=0
    #allocation2 [shape = 'u8[4096]{0}', space=vmem, size = 0x1000, scoped, tag = 'output window, operand 0, single buffered']
    #allocation3 [shape = 's32[1]{0}', space=sflag, size = 0x4, scoped, tag = 'scoped memory for tpu_custom_call.1']
    %11 = vsyncpa [#allocation3], 0
    // Predicated region
    $region2: #{tpu_custom_call.1} parent=1 // pred_check
      _
    $region3: #{tpu_custom_call.1} parent=1 // pred_check_branch
      %13 = sbr.rel (0) target = $region5
    $region4: #{tpu_custom_call.1} parent=1 // pred_region
      _
    $region5: #{tpu_custom_call.1} parent=1 // pred_fallthru
      _
    // Predicated region
    $region6: #{tpu_custom_call.1} parent=1 // pred_check
      _
    $region7: #{tpu_custom_call.1} parent=1 // pred_check_branch
      %15 = sbr.rel (0) target = $region9
    $region8: #{tpu_custom_call.1} parent=1 // pred_region
      _
    $region9: #{tpu_custom_call.1} parent=1 // pred_fallthru
      _
    // Predicated region
    $region10: #{tpu_custom_call.1} parent=1 // pred_check
      _
    $region11: #{tpu_custom_call.1} parent=1 // pred_check_branch
      %17 = sbr.rel (0) target = $region13
    $region12: #{tpu_custom_call.1} parent=1 // pred_region
      _
    $region13: #{tpu_custom_call.1} parent=1 // pred_fallthru
      _
    // Predicated region
    $region14: #{tpu_custom_call.1} parent=1 // pred_check
      _
    $region15: #{tpu_custom_call.1} parent=1 // pred_check_branch
      %19 = sbr.rel (0) target = $region17
    $region16: #{tpu_custom_call.1} parent=1 // pred_region
      _
    $region17: #{tpu_custom_call.1} parent=1 // pred_fallthru
      _
    // Predicated region
    $region18: #{tpu_custom_call.1} parent=1 // pred_check
      _
    $region19: #{tpu_custom_call.1} parent=1 // pred_check_branch
      %21 = sbr.rel (0) target = $region21
    $region20: #{tpu_custom_call.1} parent=1 // pred_region
      _
    $region21: #{tpu_custom_call.1} parent=1 // pred_fallthru
      _
    // Predicated region
    $region22: #{tpu_custom_call.1} parent=1 // pred_check
      _
    $region23: #{tpu_custom_call.1} parent=1 // pred_check_branch
      %23 = sbr.rel (0) target = $region25
    $region24: #{tpu_custom_call.1} parent=1 // pred_region
      _
    $region25: #{tpu_custom_call.1} parent=1 // pred_fallthru
      _
    %v25 = vld [vmem:[%s0] sm:$0x3]
    %v26 = vld [vmem:[%s1] sm:$0x3]
    %v27 = vld [vmem:[%s2] sm:$0xff]
    %vm28 = vcmp.eq.s32.totalorder %v26, 0
    %v29 = vlaneseq
    %v30 = vshrl.u32 %v29, 7
    %v31 = vsub.s32 0, %v30
    %v32 = vrot.slane %v27, %v31
    %v33 = vsel %vm28, %v32, 0.0
    %vm34 = vcmp.eq.s32.totalorder %v26, 1
    %v35 = vlaneseq
    %v36 = vshrl.u32 %v35, 7
    %v37 = vsub.s32 1, %v36
    %v38 = vrot.slane %v27, %v37
    %v39 = vsel %vm34, %v38, %v33
    %vm40 = vcmp.eq.s32.totalorder %v26, 2
    %v41 = vlaneseq
    %v42 = vshrl.u32 %v41, 7
    %v43 = vsub.s32 2, %v42
    %v44 = vrot.slane %v27, %v43
    %v45 = vsel %vm40, %v44, %v39
    %vm46 = vcmp.eq.s32.totalorder %v26, 3
    %v47 = vlaneseq
    %v48 = vshrl.u32 %v47, 7
    %v49 = vsub.s32 3, %v48
    %v50 = vrot.slane %v27, %v49
    %v51 = vsel %vm46, %v50, %v45
    %vm52 = vcmp.eq.s32.totalorder %v26, 4
    %v53 = vlaneseq
    %v54 = vshrl.u32 %v53, 7
    %v55 = vsub.s32 4, %v54
    %v56 = vrot.slane %v27, %v55
    %v57 = vsel %vm52, %v56, %v51
    %vm58 = vcmp.eq.s32.totalorder %v26, 5
    %v59 = vlaneseq
    %v60 = vshrl.u32 %v59, 7
    %v61 = vsub.s32 5, %v60
    %v62 = vrot.slane %v27, %v61
    %v63 = vsel %vm58, %v62, %v57
    %vm64 = vcmp.eq.s32.totalorder %v26, 6
    %v65 = vlaneseq
    %v66 = vshrl.u32 %v65, 7
    %v67 = vsub.s32 6, %v66
    %v68 = vrot.slane %v27, %v67
    %v69 = vsel %vm64, %v68, %v63
    %vm70 = vcmp.eq.s32.totalorder %v26, 7
    %v71 = vlaneseq
    %v72 = vshrl.u32 %v71, 7
    %v73 = vsub.s32 7, %v72
    %v74 = vrot.slane %v27, %v73
    %v75 = vsel %vm70, %v74, %v69
    %v76 = vld [vmem:[%s3] sm:$0xff]
    %v77 = vld [vmem:[%s3 + $0x8] sm:$0xff]
    %v78 = vld [vmem:[%s3 + $0x10] sm:$0xff]
    %v79 = vld [vmem:[%s3 + $0x18] sm:$0xff]
    %v80 = vld [vmem:[%s3 + $0x20] sm:$0xff]
    %v81 = vld [vmem:[%s3 + $0x28] sm:$0xff]
    %v82 = vld [vmem:[%s3 + $0x30] sm:$0xff]
    %v83 = vld [vmem:[%s3 + $0x38] sm:$0xff]
    %v84 = vld [vmem:[%s3 + $0x40] sm:$0xff]
    %v85 = vld [vmem:[%s3 + $0x48] sm:$0xff]
    %v86 = vld [vmem:[%s3 + $0x50] sm:$0xff]
    %v87 = vld [vmem:[%s3 + $0x58] sm:$0xff]
    %v88 = vld [vmem:[%s3 + $0x60] sm:$0xff]
    %v89 = vld [vmem:[%s3 + $0x68] sm:$0xff]
    %v90 = vld [vmem:[%s3 + $0x70] sm:$0xff]
    %v91 = vld [vmem:[%s3 + $0x78] sm:$0xff]
    %v92 = vld [vmem:[%s3 + $0x80] sm:$0xff]
    %v93 = vld [vmem:[%s3 + $0x88] sm:$0xff]
    %v94 = vld [vmem:[%s3 + $0x90] sm:$0xff]
    %v95 = vld [vmem:[%s3 + $0x98] sm:$0xff]
    %v96 = vld [vmem:[%s3 + $0xa0] sm:$0xff]
    %v97 = vld [vmem:[%s3 + $0xa8] sm:$0xff]
    %v98 = vld [vmem:[%s3 + $0xb0] sm:$0xff]
    %v99 = vld [vmem:[%s3 + $0xb8] sm:$0xff]
    %v100 = vld [vmem:[%s3 + $0xc0] sm:$0xff]
    %v101 = vld [vmem:[%s3 + $0xc8] sm:$0xff]
    %v102 = vld [vmem:[%s3 + $0xd0] sm:$0xff]
    %v103 = vld [vmem:[%s3 + $0xd8] sm:$0xff]
    %v104 = vld [vmem:[%s3 + $0xe0] sm:$0xff]
    %v105 = vld [vmem:[%s3 + $0xe8] sm:$0xff]
    %v106 = vld [vmem:[%s3 + $0xf0] sm:$0xff]
    %v107 = vld [vmem:[%s3 + $0xf8] sm:$0xff]
    %v108 = vpack.c.bf16 %v25, %v25
    %v109 = vunpack.c.l.bf16 %v108
    %v110 = vsub.f32 %v25, %v109
    %v111 = vpack.c.bf16 %v110, %v110
    %v144 = vunpack.c.l.b16 %v76
    %v145 = vunpack.c.h.b16 %v76
    %v146 = vunpack.c.l.b16 %v77
    %v147 = vunpack.c.h.b16 %v77
    %v148 = vunpack.c.l.b16 %v78
    %v149 = vunpack.c.h.b16 %v78
    %v150 = vunpack.c.l.b16 %v79
    %v151 = vunpack.c.h.b16 %v79
    %v152 = vunpack.c.l.b16 %v80
    %v153 = vunpack.c.h.b16 %v80
    %v154 = vunpack.c.l.b16 %v81
    %v155 = vunpack.c.h.b16 %v81
    %v156 = vunpack.c.l.b16 %v82
    %v157 = vunpack.c.h.b16 %v82
    %v158 = vunpack.c.l.b16 %v83
    %v159 = vunpack.c.h.b16 %v83
    %v160 = vunpack.c.l.b16 %v84
    %v161 = vunpack.c.h.b16 %v84
    %v162 = vunpack.c.l.b16 %v85
    %v163 = vunpack.c.h.b16 %v85
    %v164 = vunpack.c.l.b16 %v86
    %v165 = vunpack.c.h.b16 %v86
    %v166 = vunpack.c.l.b16 %v87
    %v167 = vunpack.c.h.b16 %v87
    %v168 = vunpack.c.l.b16 %v88
    %v169 = vunpack.c.h.b16 %v88
    %v170 = vunpack.c.l.b16 %v89
    %v171 = vunpack.c.h.b16 %v89
    %v172 = vunpack.c.l.b16 %v90
    %v173 = vunpack.c.h.b16 %v90
    %v174 = vunpack.c.l.b16 %v91
    %v175 = vunpack.c.h.b16 %v91
    %v176 = vunpack.c.l.b16 %v92
    %v177 = vunpack.c.h.b16 %v92
    %v178 = vunpack.c.l.b16 %v93
    %v179 = vunpack.c.h.b16 %v93
    %v180 = vunpack.c.l.b16 %v94
    %v181 = vunpack.c.h.b16 %v94
    %v182 = vunpack.c.l.b16 %v95
    %v183 = vunpack.c.h.b16 %v95
    %v184 = vunpack.c.l.b16 %v96
    %v185 = vunpack.c.h.b16 %v96
    %v186 = vunpack.c.l.b16 %v97
    %v187 = vunpack.c.h.b16 %v97
    %v188 = vunpack.c.l.b16 %v98
    %v189 = vunpack.c.h.b16 %v98
    %v190 = vunpack.c.l.b16 %v99
    %v191 = vunpack.c.h.b16 %v99
    %v192 = vunpack.c.l.b16 %v100
    %v193 = vunpack.c.h.b16 %v100
    %v194 = vunpack.c.l.b16 %v101
    %v195 = vunpack.c.h.b16 %v101
    %v196 = vunpack.c.l.b16 %v102
    %v197 = vunpack.c.h.b16 %v102
    %v198 = vunpack.c.l.b16 %v103
    %v199 = vunpack.c.h.b16 %v103
    %v200 = vunpack.c.l.b16 %v104
    %v201 = vunpack.c.h.b16 %v104
    %v202 = vunpack.c.l.b16 %v105
    %v203 = vunpack.c.h.b16 %v105
    %v204 = vunpack.c.l.b16 %v106
    %v205 = vunpack.c.h.b16 %v106
    %v206 = vunpack.c.l.b16 %v107
    %v207 = vunpack.c.h.b16 %v107
    %v208 = vpack.c.b16 %v148, %v144
    %v209 = vpack.c.b16 %v149, %v145
    %v210 = vpack.c.b16 %v150, %v146
    %v211 = vpack.c.b16 %v151, %v147
    %v212 = vpack.c.b16 %v156, %v152
    %v213 = vpack.c.b16 %v157, %v153
    %v214 = vpack.c.b16 %v158, %v154
    %v215 = vpack.c.b16 %v159, %v155
    %v216 = vpack.c.b16 %v164, %v160
    %v217 = vpack.c.b16 %v165, %v161
    %v218 = vpack.c.b16 %v166, %v162
    %v219 = vpack.c.b16 %v167, %v163
    %v220 = vpack.c.b16 %v172, %v168
    %v221 = vpack.c.b16 %v173, %v169
    %v222 = vpack.c.b16 %v174, %v170
    %v223 = vpack.c.b16 %v175, %v171
    %v224 = vpack.c.b16 %v180, %v176
    %v225 = vpack.c.b16 %v181, %v177
    %v226 = vpack.c.b16 %v182, %v178
    %v227 = vpack.c.b16 %v183, %v179
    %v228 = vpack.c.b16 %v188, %v184
    %v229 = vpack.c.b16 %v189, %v185
    %v230 = vpack.c.b16 %v190, %v186
    %v231 = vpack.c.b16 %v191, %v187
    %v232 = vpack.c.b16 %v196, %v192
    %v233 = vpack.c.b16 %v197, %v193
    %v234 = vpack.c.b16 %v198, %v194
    %v235 = vpack.c.b16 %v199, %v195
    %v236 = vpack.c.b16 %v204, %v200
    %v237 = vpack.c.b16 %v205, %v201
    %v238 = vpack.c.b16 %v206, %v202
    %v239 = vpack.c.b16 %v207, %v203
    %272 = vmatprep.subr.bf16.mxu0 %v209
    %273 = vmatpush1.bf16.msra.mxu0 %v208
    %274 = vmatprep.subr.bf16.mxu0 %v213
    %275 = vmatpush1.bf16.msra.mxu0 %v212
    %276 = vmatprep.subr.bf16.mxu0 %v217
    %277 = vmatpush1.bf16.msra.mxu0 %v216
    %278 = vmatprep.subr.bf16.mxu0 %v221
    %279 = vmatpush1.bf16.msra.mxu0 %v220
    %280 = vmatprep.subr.bf16.mxu0 %v225
    %281 = vmatpush1.bf16.msra.mxu0 %v224
    %282 = vmatprep.subr.bf16.mxu0 %v229
    %283 = vmatpush1.bf16.msra.mxu0 %v228
    %284 = vmatprep.subr.bf16.mxu0 %v233
    %285 = vmatpush1.bf16.msra.mxu0 %v232
    %286 = vmatprep.subr.bf16.mxu0 %v237
    %287 = vmatpush1.bf16.msra.mxu0 %v236
    %288 = vmatprep.subr.bf16.mxu0 0
    %289 = vmatpush1.bf16.msra.mxu0 0
    %290 = vmatprep.subr.bf16.mxu0 0
    %291 = vmatpush1.bf16.msra.mxu0 0
    %292 = vmatprep.subr.bf16.mxu0 0
    %293 = vmatpush1.bf16.msra.mxu0 0
    %294 = vmatprep.subr.bf16.mxu0 0
    %295 = vmatpush1.bf16.msra.mxu0 0
    %296 = vmatprep.subr.bf16.mxu0 0
    %297 = vmatpush1.bf16.msra.mxu0 0
    %298 = vmatprep.subr.bf16.mxu0 0
    %299 = vmatpush1.bf16.msra.mxu0 0
    %300 = vmatprep.subr.bf16.mxu0 0
    %301 = vmatpush1.bf16.msra.mxu0 0
    %302 = vmatprep.subr.bf16.mxu0 0
    %303 = vmatpush1.bf16.msra.mxu0 0
    %304 = vmatprep.mubr.bf16.mxu0 0
    %305 = vmatmul.mubr.bf16.gmra.mrb[0].mxu0 %v111
    %v306 = vpop.f32.mrb[0].mxu0
    %v307 = vadd.f32 0.0, %v306
    %v308 = vpop.f32.mrb[0].mxu0
    %v309 = vadd.f32 0.0, %v308
    %v310 = vpop.f32.mrb[0].mxu0
    %v311 = vpop.f32.mrb[0].mxu0
    %312 = vdwg.mxu0
    %313 = vmatprep.subr.bf16.mxu0 %v211
    %314 = vmatpush1.bf16.msra.mxu0 %v210
    %315 = vmatprep.subr.bf16.mxu0 %v215
    %316 = vmatpush1.bf16.msra.mxu0 %v214
    %317 = vmatprep.subr.bf16.mxu0 %v219
    %318 = vmatpush1.bf16.msra.mxu0 %v218
    %319 = vmatprep.subr.bf16.mxu0 %v223
    %320 = vmatpush1.bf16.msra.mxu0 %v222
    %321 = vmatprep.subr.bf16.mxu0 %v227
    %322 = vmatpush1.bf16.msra.mxu0 %v226
    %323 = vmatprep.subr.bf16.mxu0 %v231
    %324 = vmatpush1.bf16.msra.mxu0 %v230
    %325 = vmatprep.subr.bf16.mxu0 %v235
    %326 = vmatpush1.bf16.msra.mxu0 %v234
    %327 = vmatprep.subr.bf16.mxu0 %v239
    %328 = vmatpush1.bf16.msra.mxu0 %v238
    %329 = vmatprep.subr.bf16.mxu0 0
    %330 = vmatpush1.bf16.msra.mxu0 0
    %331 = vmatprep.subr.bf16.mxu0 0
    %332 = vmatpush1.bf16.msra.mxu0 0
    %333 = vmatprep.subr.bf16.mxu0 0
    %334 = vmatpush1.bf16.msra.mxu0 0
    %335 = vmatprep.subr.bf16.mxu0 0
    %336 = vmatpush1.bf16.msra.mxu0 0
    %337 = vmatprep.subr.bf16.mxu0 0
    %338 = vmatpush1.bf16.msra.mxu0 0
    %339 = vmatprep.subr.bf16.mxu0 0
    %340 = vmatpush1.bf16.msra.mxu0 0
    %341 = vmatprep.subr.bf16.mxu0 0
    %342 = vmatpush1.bf16.msra.mxu0 0
    %343 = vmatprep.subr.bf16.mxu0 0
    %344 = vmatpush1.bf16.msra.mxu0 0
    %345 = vmatprep.mubr.bf16.mxu0 0
    %346 = vmatmul.mubr.bf16.gmra.mrb[0].mxu0 %v111
    %v347 = vpop.f32.mrb[0].mxu0
    %v348 = vadd.f32 0.0, %v347
    %v349 = vpop.f32.mrb[0].mxu0
    %v350 = vadd.f32 0.0, %v349
    %v351 = vpop.f32.mrb[0].mxu0
    %v352 = vpop.f32.mrb[0].mxu0
    %353 = vdwg.mxu0
    %354 = vmatprep.subr.bf16.mxu0 %v209
    %355 = vmatpush1.bf16.msra.mxu0 %v208
    %356 = vmatprep.subr.bf16.mxu0 %v213
    %357 = vmatpush1.bf16.msra.mxu0 %v212
    %358 = vmatprep.subr.bf16.mxu0 %v217
    %359 = vmatpush1.bf16.msra.mxu0 %v216
    %360 = vmatprep.subr.bf16.mxu0 %v221
    %361 = vmatpush1.bf16.msra.mxu0 %v220
    %362 = vmatprep.subr.bf16.mxu0 %v225
    %363 = vmatpush1.bf16.msra.mxu0 %v224
    %364 = vmatprep.subr.bf16.mxu0 %v229
    %365 = vmatpush1.bf16.msra.mxu0 %v228
    %366 = vmatprep.subr.bf16.mxu0 %v233
    %367 = vmatpush1.bf16.msra.mxu0 %v232
    %368 = vmatprep.subr.bf16.mxu0 %v237
    %369 = vmatpush1.bf16.msra.mxu0 %v236
    %370 = vmatprep.subr.bf16.mxu0 0
    %371 = vmatpush1.bf16.msra.mxu0 0
    %372 = vmatprep.subr.bf16.mxu0 0
    %373 = vmatpush1.bf16.msra.mxu0 0
    %374 = vmatprep.subr.bf16.mxu0 0
    %375 = vmatpush1.bf16.msra.mxu0 0
    %376 = vmatprep.subr.bf16.mxu0 0
    %377 = vmatpush1.bf16.msra.mxu0 0
    %378 = vmatprep.subr.bf16.mxu0 0
    %379 = vmatpush1.bf16.msra.mxu0 0
    %380 = vmatprep.subr.bf16.mxu0 0
    %381 = vmatpush1.bf16.msra.mxu0 0
    %382 = vmatprep.subr.bf16.mxu0 0
    %383 = vmatpush1.bf16.msra.mxu0 0
    %384 = vmatprep.subr.bf16.mxu0 0
    %385 = vmatpush1.bf16.msra.mxu0 0
    %386 = vmatprep.mubr.bf16.mxu0 0
    %387 = vmatmul.mubr.bf16.gmra.mrb[0].mxu0 %v108
    %v388 = vpop.f32.mrb[0].mxu0
    %v389 = vadd.f32 %v307, %v388
    %v390 = vpop.f32.mrb[0].mxu0
    %v391 = vadd.f32 %v309, %v390
    %v392 = vpop.f32.mrb[0].mxu0
    %v393 = vpop.f32.mrb[0].mxu0
    %394 = vdwg.mxu0
    %395 = vmatprep.subr.bf16.mxu0 %v211
    %396 = vmatpush1.bf16.msra.mxu0 %v210
    %397 = vmatprep.subr.bf16.mxu0 %v215
    %398 = vmatpush1.bf16.msra.mxu0 %v214
    %399 = vmatprep.subr.bf16.mxu0 %v219
    %400 = vmatpush1.bf16.msra.mxu0 %v218
    %401 = vmatprep.subr.bf16.mxu0 %v223
    %402 = vmatpush1.bf16.msra.mxu0 %v222
    %403 = vmatprep.subr.bf16.mxu0 %v227
    %404 = vmatpush1.bf16.msra.mxu0 %v226
    %405 = vmatprep.subr.bf16.mxu0 %v231
    %406 = vmatpush1.bf16.msra.mxu0 %v230
    %407 = vmatprep.subr.bf16.mxu0 %v235
    %408 = vmatpush1.bf16.msra.mxu0 %v234
    %409 = vmatprep.subr.bf16.mxu0 %v239
    %410 = vmatpush1.bf16.msra.mxu0 %v238
    %411 = vmatprep.subr.bf16.mxu0 0
    %412 = vmatpush1.bf16.msra.mxu0 0
    %413 = vmatprep.subr.bf16.mxu0 0
    %414 = vmatpush1.bf16.msra.mxu0 0
    %415 = vmatprep.subr.bf16.mxu0 0
    %416 = vmatpush1.bf16.msra.mxu0 0
    %417 = vmatprep.subr.bf16.mxu0 0
    %418 = vmatpush1.bf16.msra.mxu0 0
    %419 = vmatprep.subr.bf16.mxu0 0
    %420 = vmatpush1.bf16.msra.mxu0 0
    %421 = vmatprep.subr.bf16.mxu0 0
    %422 = vmatpush1.bf16.msra.mxu0 0
    %423 = vmatprep.subr.bf16.mxu0 0
    %424 = vmatpush1.bf16.msra.mxu0 0
    %425 = vmatprep.subr.bf16.mxu0 0
    %426 = vmatpush1.bf16.msra.mxu0 0
    %427 = vmatprep.mubr.bf16.mxu0 0
    %428 = vmatmul.mubr.bf16.gmra.mrb[0].mxu0 %v108
    %v429 = vpop.f32.mrb[0].mxu0
    %v430 = vadd.f32 %v348, %v429
    %v431 = vpop.f32.mrb[0].mxu0
    %v432 = vadd.f32 %v350, %v431
    %v433 = vpop.f32.mrb[0].mxu0
    %v434 = vpop.f32.mrb[0].mxu0
    %435 = vdwg.mxu0
    %v436 = vunpack.c.l.bf16 %v111
    %v437 = vsub.f32 %v110, %v436
    %v438 = vpack.c.bf16 %v437, %v437
    %439 = vmatprep.subr.bf16.mxu0 %v209
    %440 = vmatpush1.bf16.msra.mxu0 %v208
    %441 = vmatprep.subr.bf16.mxu0 %v213
    %442 = vmatpush1.bf16.msra.mxu0 %v212
    %443 = vmatprep.subr.bf16.mxu0 %v217
    %444 = vmatpush1.bf16.msra.mxu0 %v216
    %445 = vmatprep.subr.bf16.mxu0 %v221
    %446 = vmatpush1.bf16.msra.mxu0 %v220
    %447 = vmatprep.subr.bf16.mxu0 %v225
    %448 = vmatpush1.bf16.msra.mxu0 %v224
    %449 = vmatprep.subr.bf16.mxu0 %v229
    %450 = vmatpush1.bf16.msra.mxu0 %v228
    %451 = vmatprep.subr.bf16.mxu0 %v233
    %452 = vmatpush1.bf16.msra.mxu0 %v232
    %453 = vmatprep.subr.bf16.mxu0 %v237
    %454 = vmatpush1.bf16.msra.mxu0 %v236
    %455 = vmatprep.subr.bf16.mxu0 0
    %456 = vmatpush1.bf16.msra.mxu0 0
    %457 = vmatprep.subr.bf16.mxu0 0
    %458 = vmatpush1.bf16.msra.mxu0 0
    %459 = vmatprep.subr.bf16.mxu0 0
    %460 = vmatpush1.bf16.msra.mxu0 0
    %461 = vmatprep.subr.bf16.mxu0 0
    %462 = vmatpush1.bf16.msra.mxu0 0
    %463 = vmatprep.subr.bf16.mxu0 0
    %464 = vmatpush1.bf16.msra.mxu0 0
    %465 = vmatprep.subr.bf16.mxu0 0
    %466 = vmatpush1.bf16.msra.mxu0 0
    %467 = vmatprep.subr.bf16.mxu0 0
    %468 = vmatpush1.bf16.msra.mxu0 0
    %469 = vmatprep.subr.bf16.mxu0 0
    %470 = vmatpush1.bf16.msra.mxu0 0
    %471 = vmatprep.mubr.bf16.mxu0 0
    %472 = vmatmul.mubr.bf16.gmra.mrb[0].mxu0 %v438
    %v473 = vpop.f32.mrb[0].mxu0
    %v474 = vadd.f32 0.0, %v473
    %v475 = vpop.f32.mrb[0].mxu0
    %v476 = vadd.f32 0.0, %v475
    %v477 = vpop.f32.mrb[0].mxu0
    %v478 = vpop.f32.mrb[0].mxu0
    %479 = vdwg.mxu0
    %480 = vmatprep.subr.bf16.mxu0 %v211
    %481 = vmatpush1.bf16.msra.mxu0 %v210
    %482 = vmatprep.subr.bf16.mxu0 %v215
    %483 = vmatpush1.bf16.msra.mxu0 %v214
    %484 = vmatprep.subr.bf16.mxu0 %v219
    %485 = vmatpush1.bf16.msra.mxu0 %v218
    %486 = vmatprep.subr.bf16.mxu0 %v223
    %487 = vmatpush1.bf16.msra.mxu0 %v222
    %488 = vmatprep.subr.bf16.mxu0 %v227
    %489 = vmatpush1.bf16.msra.mxu0 %v226
    %490 = vmatprep.subr.bf16.mxu0 %v231
    %491 = vmatpush1.bf16.msra.mxu0 %v230
    %492 = vmatprep.subr.bf16.mxu0 %v235
    %493 = vmatpush1.bf16.msra.mxu0 %v234
    %494 = vmatprep.subr.bf16.mxu0 %v239
    %495 = vmatpush1.bf16.msra.mxu0 %v238
    %496 = vmatprep.subr.bf16.mxu0 0
    %497 = vmatpush1.bf16.msra.mxu0 0
    %498 = vmatprep.subr.bf16.mxu0 0
    %499 = vmatpush1.bf16.msra.mxu0 0
    %500 = vmatprep.subr.bf16.mxu0 0
    %501 = vmatpush1.bf16.msra.mxu0 0
    %502 = vmatprep.subr.bf16.mxu0 0
    %503 = vmatpush1.bf16.msra.mxu0 0
    %504 = vmatprep.subr.bf16.mxu0 0
    %505 = vmatpush1.bf16.msra.mxu0 0
    %506 = vmatprep.subr.bf16.mxu0 0
    %507 = vmatpush1.bf16.msra.mxu0 0
    %508 = vmatprep.subr.bf16.mxu0 0
    %509 = vmatpush1.bf16.msra.mxu0 0
    %510 = vmatprep.subr.bf16.mxu0 0
    %511 = vmatpush1.bf16.msra.mxu0 0
    %512 = vmatprep.mubr.bf16.mxu0 0
    %513 = vmatmul.mubr.bf16.gmra.mrb[0].mxu0 %v438
    %v514 = vpop.f32.mrb[0].mxu0
    %v515 = vadd.f32 0.0, %v514
    %v516 = vpop.f32.mrb[0].mxu0
    %v517 = vadd.f32 0.0, %v516
    %v518 = vpop.f32.mrb[0].mxu0
    %v519 = vpop.f32.mrb[0].mxu0
    %520 = vdwg.mxu0
    %v521 = vadd.f32 %v389, %v474
    %v522 = vadd.f32 %v391, %v476
    %v523 = vadd.f32 %v430, %v515
    %v524 = vadd.f32 %v432, %v517
    %v525 = vld [vmem:[%s4] sm:$0xff]
    %v526 = vld [vmem:[%s4 + $0x8] sm:$0xff]
    %v527 = vld [vmem:[%s4 + $0x10] sm:$0xff]
    %v528 = vld [vmem:[%s4 + $0x18] sm:$0xff]
    %v529 = vld [vmem:[%s4 + $0x20] sm:$0xff]
    %v530 = vld [vmem:[%s4 + $0x28] sm:$0xff]
    %v531 = vld [vmem:[%s4 + $0x30] sm:$0xff]
    %v532 = vld [vmem:[%s4 + $0x38] sm:$0xff]
    %v533 = vld [vmem:[%s4 + $0x40] sm:$0xff]
    %v534 = vld [vmem:[%s4 + $0x48] sm:$0xff]
    %v535 = vld [vmem:[%s4 + $0x50] sm:$0xff]
    %v536 = vld [vmem:[%s4 + $0x58] sm:$0xff]
    %v537 = vld [vmem:[%s4 + $0x60] sm:$0xff]
    %v538 = vld [vmem:[%s4 + $0x68] sm:$0xff]
    %v539 = vld [vmem:[%s4 + $0x70] sm:$0xff]
    %v540 = vld [vmem:[%s4 + $0x78] sm:$0xff]
    %v541 = vld [vmem:[%s4 + $0x80] sm:$0xff]
    %v542 = vld [vmem:[%s4 + $0x88] sm:$0xff]
    %v543 = vld [vmem:[%s4 + $0x90] sm:$0xff]
    %v544 = vld [vmem:[%s4 + $0x98] sm:$0xff]
    %v545 = vld [vmem:[%s4 + $0xa0] sm:$0xff]
    %v546 = vld [vmem:[%s4 + $0xa8] sm:$0xff]
    %v547 = vld [vmem:[%s4 + $0xb0] sm:$0xff]
    %v548 = vld [vmem:[%s4 + $0xb8] sm:$0xff]
    %v549 = vld [vmem:[%s4 + $0xc0] sm:$0xff]
    %v550 = vld [vmem:[%s4 + $0xc8] sm:$0xff]
    %v551 = vld [vmem:[%s4 + $0xd0] sm:$0xff]
    %v552 = vld [vmem:[%s4 + $0xd8] sm:$0xff]
    %v553 = vld [vmem:[%s4 + $0xe0] sm:$0xff]
    %v554 = vld [vmem:[%s4 + $0xe8] sm:$0xff]
    %v555 = vld [vmem:[%s4 + $0xf0] sm:$0xff]
    %v556 = vld [vmem:[%s4 + $0xf8] sm:$0xff]
    %v557 = vpack.c.bf16 %v75, %v75
    %v558 = vunpack.c.l.bf16 %v557
    %v559 = vsub.f32 %v75, %v558
    %v560 = vpack.c.bf16 %v559, %v559
    %v593 = vunpack.c.l.b16 %v525
    %v594 = vunpack.c.h.b16 %v525
    %v595 = vunpack.c.l.b16 %v526
    %v596 = vunpack.c.h.b16 %v526
    %v597 = vunpack.c.l.b16 %v527
    %v598 = vunpack.c.h.b16 %v527
    %v599 = vunpack.c.l.b16 %v528
    %v600 = vunpack.c.h.b16 %v528
    %v601 = vunpack.c.l.b16 %v529
    %v602 = vunpack.c.h.b16 %v529
    %v603 = vunpack.c.l.b16 %v530
    %v604 = vunpack.c.h.b16 %v530
    %v605 = vunpack.c.l.b16 %v531
    %v606 = vunpack.c.h.b16 %v531
    %v607 = vunpack.c.l.b16 %v532
    %v608 = vunpack.c.h.b16 %v532
    %v609 = vunpack.c.l.b16 %v533
    %v610 = vunpack.c.h.b16 %v533
    %v611 = vunpack.c.l.b16 %v534
    %v612 = vunpack.c.h.b16 %v534
    %v613 = vunpack.c.l.b16 %v535
    %v614 = vunpack.c.h.b16 %v535
    %v615 = vunpack.c.l.b16 %v536
    %v616 = vunpack.c.h.b16 %v536
    %v617 = vunpack.c.l.b16 %v537
    %v618 = vunpack.c.h.b16 %v537
    %v619 = vunpack.c.l.b16 %v538
    %v620 = vunpack.c.h.b16 %v538
    %v621 = vunpack.c.l.b16 %v539
    %v622 = vunpack.c.h.b16 %v539
    %v623 = vunpack.c.l.b16 %v540
    %v624 = vunpack.c.h.b16 %v540
    %v625 = vunpack.c.l.b16 %v541
    %v626 = vunpack.c.h.b16 %v541
    %v627 = vunpack.c.l.b16 %v542
    %v628 = vunpack.c.h.b16 %v542
    %v629 = vunpack.c.l.b16 %v543
    %v630 = vunpack.c.h.b16 %v543
    %v631 = vunpack.c.l.b16 %v544
    %v632 = vunpack.c.h.b16 %v544
    %v633 = vunpack.c.l.b16 %v545
    %v634 = vunpack.c.h.b16 %v545
    %v635 = vunpack.c.l.b16 %v546
    %v636 = vunpack.c.h.b16 %v546
    %v637 = vunpack.c.l.b16 %v547
    %v638 = vunpack.c.h.b16 %v547
    %v639 = vunpack.c.l.b16 %v548
    %v640 = vunpack.c.h.b16 %v548
    %v641 = vunpack.c.l.b16 %v549
    %v642 = vunpack.c.h.b16 %v549
    %v643 = vunpack.c.l.b16 %v550
    %v644 = vunpack.c.h.b16 %v550
    %v645 = vunpack.c.l.b16 %v551
    %v646 = vunpack.c.h.b16 %v551
    %v647 = vunpack.c.l.b16 %v552
    %v648 = vunpack.c.h.b16 %v552
    %v649 = vunpack.c.l.b16 %v553
    %v650 = vunpack.c.h.b16 %v553
    %v651 = vunpack.c.l.b16 %v554
    %v652 = vunpack.c.h.b16 %v554
    %v653 = vunpack.c.l.b16 %v555
    %v654 = vunpack.c.h.b16 %v555
    %v655 = vunpack.c.l.b16 %v556
    %v656 = vunpack.c.h.b16 %v556
    %v657 = vpack.c.b16 %v597, %v593
    %v658 = vpack.c.b16 %v598, %v594
    %v659 = vpack.c.b16 %v599, %v595
    %v660 = vpack.c.b16 %v600, %v596
    %v661 = vpack.c.b16 %v605, %v601
    %v662 = vpack.c.b16 %v606, %v602
    %v663 = vpack.c.b16 %v607, %v603
    %v664 = vpack.c.b16 %v608, %v604
    %v665 = vpack.c.b16 %v613, %v609
    %v666 = vpack.c.b16 %v614, %v610
    %v667 = vpack.c.b16 %v615, %v611
    %v668 = vpack.c.b16 %v616, %v612
    %v669 = vpack.c.b16 %v621, %v617
    %v670 = vpack.c.b16 %v622, %v618
    %v671 = vpack.c.b16 %v623, %v619
    %v672 = vpack.c.b16 %v624, %v620
    %v673 = vpack.c.b16 %v629, %v625
    %v674 = vpack.c.b16 %v630, %v626
    %v675 = vpack.c.b16 %v631, %v627
    %v676 = vpack.c.b16 %v632, %v628
    %v677 = vpack.c.b16 %v637, %v633
    %v678 = vpack.c.b16 %v638, %v634
    %v679 = vpack.c.b16 %v639, %v635
    %v680 = vpack.c.b16 %v640, %v636
    %v681 = vpack.c.b16 %v645, %v641
    %v682 = vpack.c.b16 %v646, %v642
    %v683 = vpack.c.b16 %v647, %v643
    %v684 = vpack.c.b16 %v648, %v644
    %v685 = vpack.c.b16 %v653, %v649
    %v686 = vpack.c.b16 %v654, %v650
    %v687 = vpack.c.b16 %v655, %v651
    %v688 = vpack.c.b16 %v656, %v652
    %721 = vmatprep.subr.bf16.mxu0 %v658
    %722 = vmatpush1.bf16.msra.mxu0 %v657
    %723 = vmatprep.subr.bf16.mxu0 %v662
    %724 = vmatpush1.bf16.msra.mxu0 %v661
    %725 = vmatprep.subr.bf16.mxu0 %v666
    %726 = vmatpush1.bf16.msra.mxu0 %v665
    %727 = vmatprep.subr.bf16.mxu0 %v670
    %728 = vmatpush1.bf16.msra.mxu0 %v669
    %729 = vmatprep.subr.bf16.mxu0 %v674
    %730 = vmatpush1.bf16.msra.mxu0 %v673
    %731 = vmatprep.subr.bf16.mxu0 %v678
    %732 = vmatpush1.bf16.msra.mxu0 %v677
    %733 = vmatprep.subr.bf16.mxu0 %v682
    %734 = vmatpush1.bf16.msra.mxu0 %v681
    %735 = vmatprep.subr.bf16.mxu0 %v686
    %736 = vmatpush1.bf16.msra.mxu0 %v685
    %737 = vmatprep.subr.bf16.mxu0 0
    %738 = vmatpush1.bf16.msra.mxu0 0
    %739 = vmatprep.subr.bf16.mxu0 0
    %740 = vmatpush1.bf16.msra.mxu0 0
    %741 = vmatprep.subr.bf16.mxu0 0
    %742 = vmatpush1.bf16.msra.mxu0 0
    %743 = vmatprep.subr.bf16.mxu0 0
    %744 = vmatpush1.bf16.msra.mxu0 0
    %745 = vmatprep.subr.bf16.mxu0 0
    %746 = vmatpush1.bf16.msra.mxu0 0
    %747 = vmatprep.subr.bf16.mxu0 0
    %748 = vmatpush1.bf16.msra.mxu0 0
    %749 = vmatprep.subr.bf16.mxu0 0
    %750 = vmatpush1.bf16.msra.mxu0 0
    %751 = vmatprep.subr.bf16.mxu0 0
    %752 = vmatpush1.bf16.msra.mxu0 0
    %753 = vmatprep.mubr.bf16.mxu0 0
    %754 = vmatmul.mubr.bf16.gmra.mrb[0].mxu0 %v560
    %v755 = vpop.f32.mrb[0].mxu0
    %v756 = vadd.f32 0.0, %v755
    %v757 = vpop.f32.mrb[0].mxu0
    %v758 = vadd.f32 0.0, %v757
    %v759 = vpop.f32.mrb[0].mxu0
    %v760 = vpop.f32.mrb[0].mxu0
    %761 = vdwg.mxu0
    %762 = vmatprep.subr.bf16.mxu0 %v660
    %763 = vmatpush1.bf16.msra.mxu0 %v659
    %764 = vmatprep.subr.bf16.mxu0 %v664
    %765 = vmatpush1.bf16.msra.mxu0 %v663
    %766 = vmatprep.subr.bf16.mxu0 %v668
    %767 = vmatpush1.bf16.msra.mxu0 %v667
    %768 = vmatprep.subr.bf16.mxu0 %v672
    %769 = vmatpush1.bf16.msra.mxu0 %v671
    %770 = vmatprep.subr.bf16.mxu0 %v676
    %771 = vmatpush1.bf16.msra.mxu0 %v675
    %772 = vmatprep.subr.bf16.mxu0 %v680
    %773 = vmatpush1.bf16.msra.mxu0 %v679
    %774 = vmatprep.subr.bf16.mxu0 %v684
    %775 = vmatpush1.bf16.msra.mxu0 %v683
    %776 = vmatprep.subr.bf16.mxu0 %v688
    %777 = vmatpush1.bf16.msra.mxu0 %v687
    %778 = vmatprep.subr.bf16.mxu0 0
    %779 = vmatpush1.bf16.msra.mxu0 0
    %780 = vmatprep.subr.bf16.mxu0 0
    %781 = vmatpush1.bf16.msra.mxu0 0
    %782 = vmatprep.subr.bf16.mxu0 0
    %783 = vmatpush1.bf16.msra.mxu0 0
    %784 = vmatprep.subr.bf16.mxu0 0
    %785 = vmatpush1.bf16.msra.mxu0 0
    %786 = vmatprep.subr.bf16.mxu0 0
    %787 = vmatpush1.bf16.msra.mxu0 0
    %788 = vmatprep.subr.bf16.mxu0 0
    %789 = vmatpush1.bf16.msra.mxu0 0
    %790 = vmatprep.subr.bf16.mxu0 0
    %791 = vmatpush1.bf16.msra.mxu0 0
    %792 = vmatprep.subr.bf16.mxu0 0
    %793 = vmatpush1.bf16.msra.mxu0 0
    %794 = vmatprep.mubr.bf16.mxu0 0
    %795 = vmatmul.mubr.bf16.gmra.mrb[0].mxu0 %v560
    %v796 = vpop.f32.mrb[0].mxu0
    %v797 = vadd.f32 0.0, %v796
    %v798 = vpop.f32.mrb[0].mxu0
    %v799 = vadd.f32 0.0, %v798
    %v800 = vpop.f32.mrb[0].mxu0
    %v801 = vpop.f32.mrb[0].mxu0
    %802 = vdwg.mxu0
    %803 = vmatprep.subr.bf16.mxu0 %v658
    %804 = vmatpush1.bf16.msra.mxu0 %v657
    %805 = vmatprep.subr.bf16.mxu0 %v662
    %806 = vmatpush1.bf16.msra.mxu0 %v661
    %807 = vmatprep.subr.bf16.mxu0 %v666
    %808 = vmatpush1.bf16.msra.mxu0 %v665
    %809 = vmatprep.subr.bf16.mxu0 %v670
    %810 = vmatpush1.bf16.msra.mxu0 %v669
    %811 = vmatprep.subr.bf16.mxu0 %v674
    %812 = vmatpush1.bf16.msra.mxu0 %v673
    %813 = vmatprep.subr.bf16.mxu0 %v678
    %814 = vmatpush1.bf16.msra.mxu0 %v677
    %815 = vmatprep.subr.bf16.mxu0 %v682
    %816 = vmatpush1.bf16.msra.mxu0 %v681
    %817 = vmatprep.subr.bf16.mxu0 %v686
    %818 = vmatpush1.bf16.msra.mxu0 %v685
    %819 = vmatprep.subr.bf16.mxu0 0
    %820 = vmatpush1.bf16.msra.mxu0 0
    %821 = vmatprep.subr.bf16.mxu0 0
    %822 = vmatpush1.bf16.msra.mxu0 0
    %823 = vmatprep.subr.bf16.mxu0 0
    %824 = vmatpush1.bf16.msra.mxu0 0
    %825 = vmatprep.subr.bf16.mxu0 0
    %826 = vmatpush1.bf16.msra.mxu0 0
    %827 = vmatprep.subr.bf16.mxu0 0
    %828 = vmatpush1.bf16.msra.mxu0 0
    %829 = vmatprep.subr.bf16.mxu0 0
    %830 = vmatpush1.bf16.msra.mxu0 0
    %831 = vmatprep.subr.bf16.mxu0 0
    %832 = vmatpush1.bf16.msra.mxu0 0
    %833 = vmatprep.subr.bf16.mxu0 0
    %834 = vmatpush1.bf16.msra.mxu0 0
    %835 = vmatprep.mubr.bf16.mxu0 0
    %836 = vmatmul.mubr.bf16.gmra.mrb[0].mxu0 %v557
    %v837 = vpop.f32.mrb[0].mxu0
    %v838 = vadd.f32 %v756, %v837
    %v839 = vpop.f32.mrb[0].mxu0
    %v840 = vadd.f32 %v758, %v839
    %v841 = vpop.f32.mrb[0].mxu0
    %v842 = vpop.f32.mrb[0].mxu0
    %843 = vdwg.mxu0
    %844 = vmatprep.subr.bf16.mxu0 %v660
    %845 = vmatpush1.bf16.msra.mxu0 %v659
    %846 = vmatprep.subr.bf16.mxu0 %v664
    %847 = vmatpush1.bf16.msra.mxu0 %v663
    %848 = vmatprep.subr.bf16.mxu0 %v668
    %849 = vmatpush1.bf16.msra.mxu0 %v667
    %850 = vmatprep.subr.bf16.mxu0 %v672
    %851 = vmatpush1.bf16.msra.mxu0 %v671
    %852 = vmatprep.subr.bf16.mxu0 %v676
    %853 = vmatpush1.bf16.msra.mxu0 %v675
    %854 = vmatprep.subr.bf16.mxu0 %v680
    %855 = vmatpush1.bf16.msra.mxu0 %v679
    %856 = vmatprep.subr.bf16.mxu0 %v684
    %857 = vmatpush1.bf16.msra.mxu0 %v683
    %858 = vmatprep.subr.bf16.mxu0 %v688
    %859 = vmatpush1.bf16.msra.mxu0 %v687
    %860 = vmatprep.subr.bf16.mxu0 0
    %861 = vmatpush1.bf16.msra.mxu0 0
    %862 = vmatprep.subr.bf16.mxu0 0
    %863 = vmatpush1.bf16.msra.mxu0 0
    %864 = vmatprep.subr.bf16.mxu0 0
    %865 = vmatpush1.bf16.msra.mxu0 0
    %866 = vmatprep.subr.bf16.mxu0 0
    %867 = vmatpush1.bf16.msra.mxu0 0
    %868 = vmatprep.subr.bf16.mxu0 0
    %869 = vmatpush1.bf16.msra.mxu0 0
    %870 = vmatprep.subr.bf16.mxu0 0
    %871 = vmatpush1.bf16.msra.mxu0 0
    %872 = vmatprep.subr.bf16.mxu0 0
    %873 = vmatpush1.bf16.msra.mxu0 0
    %874 = vmatprep.subr.bf16.mxu0 0
    %875 = vmatpush1.bf16.msra.mxu0 0
    %876 = vmatprep.mubr.bf16.mxu0 0
    %877 = vmatmul.mubr.bf16.gmra.mrb[0].mxu0 %v557
    %v878 = vpop.f32.mrb[0].mxu0
    %v879 = vadd.f32 %v797, %v878
    %v880 = vpop.f32.mrb[0].mxu0
    %v881 = vadd.f32 %v799, %v880
    %v882 = vpop.f32.mrb[0].mxu0
    %v883 = vpop.f32.mrb[0].mxu0
    %884 = vdwg.mxu0
    %v885 = vunpack.c.l.bf16 %v560
    %v886 = vsub.f32 %v559, %v885
    %v887 = vpack.c.bf16 %v886, %v886
    %888 = vmatprep.subr.bf16.mxu0 %v658
    %889 = vmatpush1.bf16.msra.mxu0 %v657
    %890 = vmatprep.subr.bf16.mxu0 %v662
    %891 = vmatpush1.bf16.msra.mxu0 %v661
    %892 = vmatprep.subr.bf16.mxu0 %v666
    %893 = vmatpush1.bf16.msra.mxu0 %v665
    %894 = vmatprep.subr.bf16.mxu0 %v670
    %895 = vmatpush1.bf16.msra.mxu0 %v669
    %896 = vmatprep.subr.bf16.mxu0 %v674
    %897 = vmatpush1.bf16.msra.mxu0 %v673
    %898 = vmatprep.subr.bf16.mxu0 %v678
    %899 = vmatpush1.bf16.msra.mxu0 %v677
    %900 = vmatprep.subr.bf16.mxu0 %v682
    %901 = vmatpush1.bf16.msra.mxu0 %v681
    %902 = vmatprep.subr.bf16.mxu0 %v686
    %903 = vmatpush1.bf16.msra.mxu0 %v685
    %904 = vmatprep.subr.bf16.mxu0 0
    %905 = vmatpush1.bf16.msra.mxu0 0
    %906 = vmatprep.subr.bf16.mxu0 0
    %907 = vmatpush1.bf16.msra.mxu0 0
    %908 = vmatprep.subr.bf16.mxu0 0
    %909 = vmatpush1.bf16.msra.mxu0 0
    %910 = vmatprep.subr.bf16.mxu0 0
    %911 = vmatpush1.bf16.msra.mxu0 0
    %912 = vmatprep.subr.bf16.mxu0 0
    %913 = vmatpush1.bf16.msra.mxu0 0
    %914 = vmatprep.subr.bf16.mxu0 0
    %915 = vmatpush1.bf16.msra.mxu0 0
    %916 = vmatprep.subr.bf16.mxu0 0
    %917 = vmatpush1.bf16.msra.mxu0 0
    %918 = vmatprep.subr.bf16.mxu0 0
    %919 = vmatpush1.bf16.msra.mxu0 0
    %920 = vmatprep.mubr.bf16.mxu0 0
    %921 = vmatmul.mubr.bf16.gmra.mrb[0].mxu0 %v887
    %v922 = vpop.f32.mrb[0].mxu0
    %v923 = vadd.f32 0.0, %v922
    %v924 = vpop.f32.mrb[0].mxu0
    %v925 = vadd.f32 0.0, %v924
    %v926 = vpop.f32.mrb[0].mxu0
    %v927 = vpop.f32.mrb[0].mxu0
    %928 = vdwg.mxu0
    %929 = vmatprep.subr.bf16.mxu0 %v660
    %930 = vmatpush1.bf16.msra.mxu0 %v659
    %931 = vmatprep.subr.bf16.mxu0 %v664
    %932 = vmatpush1.bf16.msra.mxu0 %v663
    %933 = vmatprep.subr.bf16.mxu0 %v668
    %934 = vmatpush1.bf16.msra.mxu0 %v667
    %935 = vmatprep.subr.bf16.mxu0 %v672
    %936 = vmatpush1.bf16.msra.mxu0 %v671
    %937 = vmatprep.subr.bf16.mxu0 %v676
    %938 = vmatpush1.bf16.msra.mxu0 %v675
    %939 = vmatprep.subr.bf16.mxu0 %v680
    %940 = vmatpush1.bf16.msra.mxu0 %v679
    %941 = vmatprep.subr.bf16.mxu0 %v684
    %942 = vmatpush1.bf16.msra.mxu0 %v683
    %943 = vmatprep.subr.bf16.mxu0 %v688
    %944 = vmatpush1.bf16.msra.mxu0 %v687
    %945 = vmatprep.subr.bf16.mxu0 0
    %946 = vmatpush1.bf16.msra.mxu0 0
    %947 = vmatprep.subr.bf16.mxu0 0
    %948 = vmatpush1.bf16.msra.mxu0 0
    %949 = vmatprep.subr.bf16.mxu0 0
    %950 = vmatpush1.bf16.msra.mxu0 0
    %951 = vmatprep.subr.bf16.mxu0 0
    %952 = vmatpush1.bf16.msra.mxu0 0
    %953 = vmatprep.subr.bf16.mxu0 0
    %954 = vmatpush1.bf16.msra.mxu0 0
    %955 = vmatprep.subr.bf16.mxu0 0
    %956 = vmatpush1.bf16.msra.mxu0 0
    %957 = vmatprep.subr.bf16.mxu0 0
    %958 = vmatpush1.bf16.msra.mxu0 0
    %959 = vmatprep.subr.bf16.mxu0 0
    %960 = vmatpush1.bf16.msra.mxu0 0
    %961 = vmatprep.mubr.bf16.mxu0 0
    %962 = vmatmul.mubr.bf16.gmra.mrb[0].mxu0 %v887
    %v963 = vpop.f32.mrb[0].mxu0
    %v964 = vadd.f32 0.0, %v963
    %v965 = vpop.f32.mrb[0].mxu0
    %v966 = vadd.f32 0.0, %v965
    %v967 = vpop.f32.mrb[0].mxu0
    %v968 = vpop.f32.mrb[0].mxu0
    %969 = vdwg.mxu0
    %v970 = vadd.f32 %v838, %v923
    %v971 = vadd.f32 %v840, %v925
    %v972 = vadd.f32 %v879, %v964
    %v973 = vadd.f32 %v881, %v966
    %v974 = vadd.f32 %v521, %v970
    %v975 = vadd.f32 %v522, %v971
    %v976 = vadd.f32 %v523, %v972
    %v977 = vadd.f32 %v524, %v973
    %v978 = vld [vmem:[%s5] sm:$0xf]
    %v980 = vlaneseq
    %v981 = vshrl.u32 %v980, 7
    %v982 = vsub.s32 0, %v981
    %v983 = vrot.slane %v978, %v982
    %v984 = vlaneseq
    %v985 = vshrl.u32 %v984, 7
    %v986 = vsub.s32 1, %v985
    %v987 = vrot.slane %v978, %v986
    %v988 = vlaneseq
    %v989 = vshrl.u32 %v988, 7
    %v990 = vsub.s32 2, %v989
    %v991 = vrot.slane %v978, %v990
    %v992 = vlaneseq
    %v993 = vshrl.u32 %v992, 7
    %v994 = vsub.s32 3, %v993
    %v995 = vrot.slane %v978, %v994
    %v1000 = vadd.f32 %v974, %v983
    %v1001 = vadd.f32 %v975, %v987
    %v1002 = vadd.f32 %v976, %v991
    %v1003 = vadd.f32 %v977, %v995
    %v1008 = vcombine.low %v1000, %v1001
    %v1009 = vcombine.low %v1002, %v1003
    %v1011 = vunpack.c.l.s4 1983009808
    %v1012 = vunpack.c.0.s8 %v1011
    %v1013 = vlaneseq
    %v1014 = vshrl.u32 %v1013, 7
    %v1015 = vsub.s32 %v1012, %v1014
    %v1016 = vrot.slane %v1008, %v1015
    %v1018 = vunpack.c.l.s4 1983009808
    %v1019 = vunpack.c.0.s8 %v1018
    %v1020 = vlaneseq
    %v1021 = vshrl.u32 %v1020, 7
    %v1022 = vsub.s32 %v1019, %v1021
    %v1023 = vrot.slane %v1009, %v1022
    %v1024 = vcombine.low %v1016, %v1023
    %vm1026 = vcmask 1041408
    %vm1027 = vcmask 1043458
    %vm1028 = vmor %vm1027, %vm1026
    %vm1029 = vcmask 1045508
    %vm1030 = vmor %vm1029, %vm1028
    %vm1031 = vcmask 785414
    %vm1032 = vmor %vm1031, %vm1030
    %1033 = vst.msk [vmem:[#allocation2] sm:$0xff] %vm1032, %v1024
    // Predicated region
    $region26: #{tpu_custom_call.1} parent=1 // pred_check
      _
    $region27: #{tpu_custom_call.1} parent=1 // pred_check_branch
      %1035 = sbr.rel (0) target = $region29
    $region28: #{tpu_custom_call.1} parent=1 // pred_region
      %s1037 = ssub.s32 128, 128
      %1038 = vsyncadd [#allocation3], %s1037
      %s1040 = sshll.u32 [#allocation2], 4
      %s1041 = int_to_ptr.vmem [resolvable:$true] %s1040
      %1043 = dma.vmem_to_hbm [thread:$0]  %s1041, 128, %s6, [#allocation3]
    $region29: #{tpu_custom_call.1} parent=1 // pred_fallthru
      _
    // Predicated region
    $region30: #{tpu_custom_call.1} parent=1 // pred_check
      _
    $region31: #{tpu_custom_call.1} parent=1 // pred_check_branch
      %1045 = sbr.rel (0) target = $region33
    $region32: #{tpu_custom_call.1} parent=1 // pred_region
      %1046 = dma.done [#allocation3], 128
    $region33: #{tpu_custom_call.1} parent=1 // pred_fallthru
      _
    %1047 = vsyncpa [#allocation3], 1

</llo_original>
